<compile_context>
chip_gen: v7x
topology: tpu7x:2x2x1
jax: 0.10.0
libtpu: 0.0.40
codegen_flags: <defaults>
</compile_context>

<pallas_src>
import functools

import jax
import jax.numpy as jnp
from jax.experimental import pallas as pl
from jax.experimental.pallas import tpu as pltpu


def _stgcn_kernel(x_ref, adj_ref, wbig_ref, aexp_ref, dmat_ref, wt_ref,
                  consts_ref, o_ref, ypad_ref, *, H, Cout, K):
    f32 = jnp.float32
    NB, T, HCin = x_ref.shape
    HC = H * Cout
    P = (K - 1) // 2
    R = NB * T

    x = x_ref[...].astype(f32).reshape(R, HCin)            # free leading-dim reshape
    adjb = adj_ref[...].astype(f32).reshape(R, H * H)      # adj[n,h,k] at lane h*H+k

    # --- ONE MXU matmul for all 1x1 channel projections, lane-dense outputs -----
    raw = jnp.dot(x, wbig_ref[...], preferred_element_type=f32)   # (R, 2*HC + 2*H)
    sup = raw[:, :HC] + consts_ref[0:1, :]      # GCN linear (+bias, BN1 scale folded)
    res = raw[:, HC:2 * HC]                     # residual 1x1 conv (BNr scale folded)
    s12 = raw[:, 2 * HC:2 * HC + 2 * H]         # [s1 (att1, index k) | s2 (att2, index h)]

    # --- attention, fully lane-dense: a[r, h*H+k] = s2[r,h] + s1[r,k] + (b1+b2) --
    bsum = consts_ref[3:4, 0:1]                                    # (1, 1)
    a = jnp.dot(s12, aexp_ref[...], preferred_element_type=f32) + bsum   # (R, H*H)
    a = jnp.where(a > 0, a, 0.01 * a)                              # LeakyReLU(0.01)
    a = a - jnp.max(a, axis=-1, keepdims=True)   # per-row shift; exact for the ratio below
    e = jnp.exp(a)
    # segmented (per-h) softmax denominator and adj-weighted numerator share one
    # constant ones-block matmul that also broadcasts the result over the Cout lanes.
    denom = jnp.dot(e, dmat_ref[...], preferred_element_type=f32)         # (R, HC)
    numer = jnp.dot(e * adjb, dmat_ref[...], preferred_element_type=f32)  # (R, HC)
    diag = numer * pl.reciprocal(jnp.maximum(denom, 1e-30), approx=True) + 1.0

    # --- GCN diag scaling + BN1 + ReLU (lane-dense) ------------------------------
    y = jnp.maximum(diag * sup + consts_ref[1:2, :], 0.0)                 # (R, HC)

    # --- temporal (K,1) conv: padded VMEM scratch + one (R,K*HC)@(K*HC,HC) matmul -
    if P > 0:
        zpad = jnp.zeros((NB, P, HC), f32)
        ypad_ref[:, 0:P, :] = zpad                      # re-zero pads every step:
        ypad_ref[:, P + T:P + T + P, :] = zpad          # safe under megacore sharding
    ypad_ref[:, P:P + T, :] = y.reshape(NB, T, HC)
    ycat = jnp.concatenate(
        [ypad_ref[:, k:k + T, :].reshape(R, HC) for k in range(K)], axis=-1)
    conv = jnp.dot(ycat, wt_ref[...], preferred_element_type=f32)         # (R, HC)

    # --- BN2 + residual + final ReLU, single lane-dense bulk store ---------------
    out = jnp.maximum(conv + res + consts_ref[2:3, :], 0.0)
    o_ref[...] = out.reshape(NB, T, HC).astype(o_ref.dtype)


def _pick_block_n(n):
    # Largest divisor of n that still leaves >=2 grid steps (v7x megacore) and keeps
    # per-step VMEM small; capped at 8 samples per step.
    cap = max(1, min(8, n // 2))
    for d in range(cap, 0, -1):
        if n % d == 0:
            return d
    return 1


def st_gcn_forward(x, adj, params, *, kernel_size=3, block_n=None, io_dtype=None):
    N, T, H, Cin = x.shape
    Cout = params["Wlin"].shape[0]
    K = kernel_size
    P = (K - 1) // 2
    HC = H * Cout
    eps = 1e-5
    f32 = jnp.float32

    # fold eval-mode BatchNorms into per-channel scale / shift
    sc1 = params["g1"] / jnp.sqrt(params["v1"] + eps)
    sh1 = params["be1"] - params["m1"] * sc1
    sc2 = params["g2"] / jnp.sqrt(params["v2"] + eps)
    sh2 = params["be2"] - params["m2"] * sc2
    scr = params["gr"] / jnp.sqrt(params["vr"] + eps)
    shr = params["ber"] - params["mr"] * scr

    eyeH = jnp.eye(H, dtype=f32)
    wlin_f = (params["Wlin"] * sc1[:, None]).T                    # (Cin, Cout)
    wr_f = (params["Wr"] * scr[:, None]).T                        # (Cin, Cout)
    # block-diagonal fused projection: x[(n,t), h*Cin+c] @ wbig -> [sup | res | s1 | s2]
    wbig = jnp.concatenate(
        [jnp.kron(eyeH, wlin_f), jnp.kron(eyeH, wr_f),
         jnp.kron(eyeH, params["w1"][:, None]),
         jnp.kron(eyeH, params["w2"][:, None])], axis=1).astype(f32)   # (H*Cin, 2*HC+2*H)

    # expansion matrices for lane-dense attention
    aexp = jnp.concatenate(
        [jnp.tile(eyeH, (1, H)),                                  # s1[k]  -> lane h*H+k
         jnp.kron(eyeH, jnp.ones((1, H), f32))], axis=0)          # s2[h]  -> lane h*H+k
    dmat = jnp.kron(eyeH, jnp.ones((H, Cout), f32))               # per-h k-sum + o-bcast

    # temporal conv weights (BN2 scale folded) as one block-diagonal (K*HC, HC) matrix
    wt_f = jnp.transpose(params["Wt"][:, :, :, 0] * sc2[:, None, None], (2, 1, 0))
    wt_blk = jnp.concatenate([jnp.kron(eyeH, wt_f[k]) for k in range(K)],
                             axis=0).astype(f32)                  # (K*HC, HC)

    # per-lane constants, tiled over joints so they match the h*Cout+o lane layout
    blin_t = jnp.tile(params["blin"] * sc1, H)                    # GCN bias * BN1 scale
    sh1_t = jnp.tile(sh1, H)                                      # BN1 shift
    bfin_t = jnp.tile(params["bt"] * sc2 + sh2 + params["br"] * scr + shr, H)
    brow = jnp.zeros((HC,), f32).at[0].set(params["b1"] + params["b2"])
    consts = jnp.stack([blin_t, sh1_t, bfin_t, brow], axis=0).astype(f32)   # (4, HC)

    # lane-dense input/output views: contiguous -> free reshapes (no transposes)
    x_ld = x.reshape(N, T, H * Cin)
    if io_dtype is not None:      # e.g. jnp.bfloat16 to halve HBM traffic on v5e/v6e
        x_ld = x_ld.astype(io_dtype)
    adj_b = jnp.broadcast_to(adj.reshape(N, 1, H * H), (N, T, H * H)).astype(f32)

    NB = block_n if block_n is not None else _pick_block_n(N)
    assert N % NB == 0, "batch must be divisible by the per-step block"
    grid = (N // NB,)

    grid_spec = pltpu.PrefetchScalarGridSpec(
        num_scalar_prefetch=0,
        grid=grid,
        in_specs=[
            pl.BlockSpec((NB, T, H * Cin), lambda g: (g, 0, 0)),
            pl.BlockSpec((NB, T, H * H), lambda g: (g, 0, 0)),
            pl.BlockSpec((H * Cin, 2 * HC + 2 * H), lambda g: (0, 0)),
            pl.BlockSpec((2 * H, H * H), lambda g: (0, 0)),
            pl.BlockSpec((H * H, HC), lambda g: (0, 0)),
            pl.BlockSpec((K * HC, HC), lambda g: (0, 0)),
            pl.BlockSpec((4, HC), lambda g: (0, 0)),
        ],
        out_specs=pl.BlockSpec((NB, T, HC), lambda g: (g, 0, 0)),
        scratch_shapes=[pltpu.VMEM((NB, T + 2 * P, HC), f32)],
    )
    out = pl.pallas_call(
        functools.partial(_stgcn_kernel, H=H, Cout=Cout, K=K),
        out_shape=jax.ShapeDtypeStruct((N, T, HC), f32),
        grid_spec=grid_spec,
        compiler_params=pltpu.CompilerParams(dimension_semantics=("parallel",)),
    )(x_ld, adj_b, wbig, aexp, dmat, wt_blk, consts)
    return out.reshape(N, T, H, Cout)


def init_params(key, Cin, Cout, K):
    ks = jax.random.split(key, 22)
    n = lambda k, shape, s=0.3: (jax.random.normal(k, shape) * s).astype(jnp.float32)
    return {
        "w1": n(ks[0], (Cin,)), "b1": n(ks[1], ()),
        "w2": n(ks[2], (Cin,)), "b2": n(ks[3], ()),
        "Wlin": n(ks[4], (Cout, Cin)), "blin": n(ks[5], (Cout,), 0.1),
        "g1": 1.0 + n(ks[6], (Cout,), 0.1), "be1": n(ks[7], (Cout,), 0.1),
        "m1": n(ks[8], (Cout,), 0.1), "v1": 1.0 + jnp.abs(n(ks[9], (Cout,), 0.2)),
        "Wt": n(ks[10], (Cout, Cout, K, 1)), "bt": n(ks[11], (Cout,), 0.1),
        "g2": 1.0 + n(ks[12], (Cout,), 0.1), "be2": n(ks[13], (Cout,), 0.1),
        "m2": n(ks[14], (Cout,), 0.1), "v2": 1.0 + jnp.abs(n(ks[15], (Cout,), 0.2)),
        "Wr": n(ks[16], (Cout, Cin)), "br": n(ks[17], (Cout,), 0.1),
        "gr": 1.0 + n(ks[18], (Cout,), 0.1), "ber": n(ks[19], (Cout,), 0.1),
        "mr": n(ks[20], (Cout,), 0.1), "vr": 1.0 + jnp.abs(n(ks[21], (Cout,), 0.2)),
    }


def reference_forward(x, adj, p, kernel_size=3):
    """Pure-JAX mirror of the PyTorch forward (unfused params), for verification."""
    hp = jax.lax.Precision.HIGHEST
    N, T, H, Cin = x.shape
    K = kernel_size
    P = (K - 1) // 2
    eps = 1e-5
    s1 = jnp.einsum("nthc,c->nth", x, p["w1"], precision=hp) + p["b1"]
    s2 = jnp.einsum("nthc,c->nth", x, p["w2"], precision=hp) + p["b2"]
    a = s1[:, :, :, None] + s2[:, :, None, :]          # a[n, t, k, h]
    a = jnp.where(a > 0, a, 0.01 * a)
    att = jax.nn.softmax(a, axis=2)                    # softmax over k (torch dim=1)
    diag = jnp.einsum("nhk,ntkh->nth", adj, att, precision=hp) + 1.0
    support = jnp.einsum("nthc,oc->ntho", x, p["Wlin"], precision=hp) + p["blin"]
    g = diag[..., None] * support
    bn = lambda z, ga, be, m, v: (z - m) / jnp.sqrt(v + eps) * ga + be
    y = jax.nn.relu(bn(g, p["g1"], p["be1"], p["m1"], p["v1"]))
    ypad = jnp.pad(y, ((0, 0), (P, P), (0, 0), (0, 0)))
    conv = sum(jnp.einsum("nthc,oc->ntho", ypad[:, k:k + T], p["Wt"][:, :, k, 0],
                          precision=hp) for k in range(K)) + p["bt"]
    y2 = bn(conv, p["g2"], p["be2"], p["m2"], p["v2"])
    r = bn(jnp.einsum("nthc,oc->ntho", x, p["Wr"], precision=hp) + p["br"],
           p["gr"], p["ber"], p["mr"], p["vr"])
    return jax.nn.relu(y2 + r)


if __name__ == "__main__":
    N, T, H, Cin, Cout, K = 2, 8, 16, 4, 8, 3

    key = jax.random.PRNGKey(0)
    kx, kp = jax.random.split(key)
    x = jax.random.normal(kx, (N, T, H, Cin), dtype=jnp.float32)

    # deterministic edge lists -> dense adjacency (edge_index_to_adj, done in glue)
    adj = jnp.zeros((N, H, H), jnp.float32)
    for n_ in range(N):
        src = jnp.arange(H)
        dst = (src + 1 + n_) % H
        rows = jnp.concatenate([src, dst])
        cols = jnp.concatenate([dst, src])
        adj = adj.at[n_, rows, cols].add(1.0)

    params = init_params(kp, Cin, Cout, K)

    out = st_gcn_forward(x, adj, params, kernel_size=K)
    out = jax.block_until_ready(out)

    ref = reference_forward(x, adj, params, kernel_size=K)
    assert out.shape == (N, T, H, Cout)
    max_err = float(jnp.max(jnp.abs(out - ref)))
    assert bool(jnp.allclose(out, ref, atol=1e-3, rtol=1e-3)), f"max_err={max_err}"
    print("KERNEL_OK")
</pallas_src>

<mosaic_0001>
module attributes {stable_mosaic.version = 11 : i64} {
  func.func @_stgcn_kernel(%arg0: i32, %arg1: memref<1x8x64xf32, #tpu.memory_space<vmem>>, %arg2: memref<1x8x256xf32, #tpu.memory_space<vmem>>, %arg3: memref<64x288xf32, #tpu.memory_space<vmem>>, %arg4: memref<32x256xf32, #tpu.memory_space<vmem>>, %arg5: memref<256x128xf32, #tpu.memory_space<vmem>>, %arg6: memref<384x128xf32, #tpu.memory_space<vmem>>, %arg7: memref<4x128xf32, #tpu.memory_space<vmem>>, %arg8: memref<1x8x128xf32, #tpu.memory_space<vmem>>, %arg9: memref<1x10x128xf32, #tpu.memory_space<vmem>>) attributes {dimension_semantics = [#tpu.dimension_semantics<parallel>], iteration_bounds = array<i64: 2>, scalar_prefetch = 0 : i64, scratch_operands = 1 : i64, tpu.core_type = #tpu.core_type<tc>, window_params = [{transform_indices = @transform_0, window_bounds = array<i64: 1, 8, 64>}, {transform_indices = @transform_1, window_bounds = array<i64: 1, 8, 256>}, {pipeline_mode = #tpu.pipeline_mode<synchronous>, transform_indices = @transform_2, window_bounds = array<i64: 64, 288>}, {pipeline_mode = #tpu.pipeline_mode<synchronous>, transform_indices = @transform_3, window_bounds = array<i64: 32, 256>}, {pipeline_mode = #tpu.pipeline_mode<synchronous>, transform_indices = @transform_4, window_bounds = array<i64: 256, 128>}, {pipeline_mode = #tpu.pipeline_mode<synchronous>, transform_indices = @transform_5, window_bounds = array<i64: 384, 128>}, {pipeline_mode = #tpu.pipeline_mode<synchronous>, transform_indices = @transform_6, window_bounds = array<i64: 4, 128>}, {transform_indices = @transform_7, window_bounds = array<i64: 1, 8, 128>}]} {
    %c0 = arith.constant 0 : index
    %c0_0 = arith.constant 0 : index
    %c0_1 = arith.constant 0 : index
    %0 = vector.load %arg1[%c0, %c0_0, %c0_1] : memref<1x8x64xf32, #tpu.memory_space<vmem>>, vector<1x8x64xf32>
    %1 = vector.shape_cast %0 : vector<1x8x64xf32> to vector<8x64xf32>
    %c0_2 = arith.constant 0 : index
    %c0_3 = arith.constant 0 : index
    %c0_4 = arith.constant 0 : index
    %2 = vector.load %arg2[%c0_2, %c0_3, %c0_4] : memref<1x8x256xf32, #tpu.memory_space<vmem>>, vector<1x8x256xf32>
    %3 = vector.shape_cast %2 : vector<1x8x256xf32> to vector<8x256xf32>
    %c0_5 = arith.constant 0 : index
    %c0_6 = arith.constant 0 : index
    %4 = vector.load %arg3[%c0_5, %c0_6] : memref<64x288xf32, #tpu.memory_space<vmem>>, vector<64x288xf32>
    %cst = arith.constant dense<0.000000e+00> : vector<8x288xf32>
    %5 = tpu.matmul %1, %4, %cst {dimension_numbers = #tpu.dot_dimension_numbers<[1], [0], [0], [1], [0, 0, 1, 1], [], []>} : vector<8x64xf32>, vector<64x288xf32>, vector<8x288xf32> -> vector<8x288xf32>
    %6 = vector.extract_strided_slice %5 {offsets = [0, 0], sizes = [8, 128], strides = [1, 1]} : vector<8x288xf32> to vector<8x128xf32>
    %c0_7 = arith.constant 0 : index
    %c0_8 = arith.constant 0 : index
    %7 = vector.load %arg7[%c0_7, %c0_8] : memref<4x128xf32, #tpu.memory_space<vmem>>, vector<1x128xf32>
    %8 = vector.broadcast %7 : vector<1x128xf32> to vector<8x128xf32>
    %9 = arith.addf %6, %8 : vector<8x128xf32>
    %10 = vector.extract_strided_slice %5 {offsets = [0, 128], sizes = [8, 128], strides = [1, 1]} : vector<8x288xf32> to vector<8x128xf32>
    %11 = vector.extract_strided_slice %5 {offsets = [0, 256], sizes = [8, 32], strides = [1, 1]} : vector<8x288xf32> to vector<8x32xf32>
    %c3 = arith.constant 3 : index
    %c0_9 = arith.constant 0 : index
    %12 = vector.load %arg7[%c3, %c0_9] : memref<4x128xf32, #tpu.memory_space<vmem>>, vector<1x1xf32>
    %c0_10 = arith.constant 0 : index
    %c0_11 = arith.constant 0 : index
    %13 = vector.load %arg4[%c0_10, %c0_11] : memref<32x256xf32, #tpu.memory_space<vmem>>, vector<32x256xf32>
    %cst_12 = arith.constant dense<0.000000e+00> : vector<8x256xf32>
    %14 = tpu.matmul %11, %13, %cst_12 {dimension_numbers = #tpu.dot_dimension_numbers<[1], [0], [0], [1], [0, 0, 1, 1], [], []>} : vector<8x32xf32>, vector<32x256xf32>, vector<8x256xf32> -> vector<8x256xf32>
    %15 = vector.broadcast %12 : vector<1x1xf32> to vector<8x256xf32>
    %16 = arith.addf %14, %15 : vector<8x256xf32>
    %cst_13 = arith.constant 0.000000e+00 : f32
    %17 = vector.broadcast %cst_13 : f32 to vector<8x256xf32>
    %18 = arith.cmpf ogt, %16, %17 : vector<8x256xf32>
    %cst_14 = arith.constant 0.00999999977 : f32
    %19 = vector.broadcast %cst_14 : f32 to vector<8x256xf32>
    %20 = arith.mulf %19, %16 : vector<8x256xf32>
    %21 = arith.select %18, %16, %20 : vector<8x256xi1>, vector<8x256xf32>
    %cst_15 = arith.constant dense<0xFF800000> : vector<8xf32>
    %22 = vector.multi_reduction <maximumf>, %21, %cst_15 [1] : vector<8x256xf32> to vector<8xf32>
    %23 = vector.shape_cast %22 : vector<8xf32> to vector<8x1xf32>
    %24 = vector.broadcast %23 : vector<8x1xf32> to vector<8x256xf32>
    %25 = arith.subf %21, %24 : vector<8x256xf32>
    %26 = math.exp %25 : vector<8x256xf32>
    %c0_16 = arith.constant 0 : index
    %c0_17 = arith.constant 0 : index
    %27 = vector.load %arg5[%c0_16, %c0_17] : memref<256x128xf32, #tpu.memory_space<vmem>>, vector<256x128xf32>
    %cst_18 = arith.constant dense<0.000000e+00> : vector<8x128xf32>
    %28 = tpu.matmul %26, %27, %cst_18 {dimension_numbers = #tpu.dot_dimension_numbers<[1], [0], [0], [1], [0, 0, 1, 1], [], []>} : vector<8x256xf32>, vector<256x128xf32>, vector<8x128xf32> -> vector<8x128xf32>
    %29 = arith.mulf %26, %3 : vector<8x256xf32>
    %c0_19 = arith.constant 0 : index
    %c0_20 = arith.constant 0 : index
    %30 = vector.load %arg5[%c0_19, %c0_20] : memref<256x128xf32, #tpu.memory_space<vmem>>, vector<256x128xf32>
    %cst_21 = arith.constant dense<0.000000e+00> : vector<8x128xf32>
    %31 = tpu.matmul %29, %30, %cst_21 {dimension_numbers = #tpu.dot_dimension_numbers<[1], [0], [0], [1], [0, 0, 1, 1], [], []>} : vector<8x256xf32>, vector<256x128xf32>, vector<8x128xf32> -> vector<8x128xf32>
    %cst_22 = arith.constant 1.000000e-30 : f32
    %32 = vector.broadcast %cst_22 : f32 to vector<8x128xf32>
    %33 = arith.maximumf %28, %32 : vector<8x128xf32>
    %34 = tpu.reciprocal %33 {approx = true} : vector<8x128xf32> -> vector<8x128xf32>
    %35 = arith.mulf %31, %34 : vector<8x128xf32>
    %cst_23 = arith.constant 1.000000e+00 : f32
    %36 = vector.broadcast %cst_23 : f32 to vector<8x128xf32>
    %37 = arith.addf %35, %36 : vector<8x128xf32>
    %38 = arith.mulf %37, %9 : vector<8x128xf32>
    %c1 = arith.constant 1 : index
    %c0_24 = arith.constant 0 : index
    %39 = vector.load %arg7[%c1, %c0_24] : memref<4x128xf32, #tpu.memory_space<vmem>>, vector<1x128xf32>
    %40 = vector.broadcast %39 : vector<1x128xf32> to vector<8x128xf32>
    %41 = arith.addf %38, %40 : vector<8x128xf32>
    %cst_25 = arith.constant 0.000000e+00 : f32
    %42 = vector.broadcast %cst_25 : f32 to vector<8x128xf32>
    %43 = arith.maximumf %41, %42 : vector<8x128xf32>
    %cst_26 = arith.constant 0.000000e+00 : f32
    %44 = vector.broadcast %cst_26 : f32 to vector<1x1x128xf32>
    %c0_27 = arith.constant 0 : index
    %c0_28 = arith.constant 0 : index
    %c0_29 = arith.constant 0 : index
    %45 = vector.load %arg9[%c0_27, %c0_28, %c0_29] : memref<1x10x128xf32, #tpu.memory_space<vmem>>, vector<1x1x128xf32>
    tpu.vector_store %arg9[%c0_27, %c0_28, %c0_29], %44 {strides = array<i32>} : memref<1x10x128xf32, #tpu.memory_space<vmem>>, vector<1x1x128xf32>,
    %c0_30 = arith.constant 0 : index
    %c9 = arith.constant 9 : index
    %c0_31 = arith.constant 0 : index
    %46 = vector.load %arg9[%c0_30, %c9, %c0_31] : memref<1x10x128xf32, #tpu.memory_space<vmem>>, vector<1x1x128xf32>
    tpu.vector_store %arg9[%c0_30, %c9, %c0_31], %44 {strides = array<i32>} : memref<1x10x128xf32, #tpu.memory_space<vmem>>, vector<1x1x128xf32>,
    %47 = vector.shape_cast %43 : vector<8x128xf32> to vector<1x8x128xf32>
    %c0_32 = arith.constant 0 : index
    %c1_33 = arith.constant 1 : index
    %c0_34 = arith.constant 0 : index
    %48 = vector.load %arg9[%c0_32, %c1_33, %c0_34] : memref<1x10x128xf32, #tpu.memory_space<vmem>>, vector<1x8x128xf32>
    tpu.vector_store %arg9[%c0_32, %c1_33, %c0_34], %47 {strides = array<i32>} : memref<1x10x128xf32, #tpu.memory_space<vmem>>, vector<1x8x128xf32>,
    %c0_35 = arith.constant 0 : index
    %c0_36 = arith.constant 0 : index
    %c0_37 = arith.constant 0 : index
    %49 = vector.load %arg9[%c0_35, %c0_36, %c0_37] : memref<1x10x128xf32, #tpu.memory_space<vmem>>, vector<1x8x128xf32>
    %50 = vector.shape_cast %49 : vector<1x8x128xf32> to vector<8x128xf32>
    %c0_38 = arith.constant 0 : index
    %c1_39 = arith.constant 1 : index
    %c0_40 = arith.constant 0 : index
    %51 = vector.load %arg9[%c0_38, %c1_39, %c0_40] : memref<1x10x128xf32, #tpu.memory_space<vmem>>, vector<1x8x128xf32>
    %52 = vector.shape_cast %51 : vector<1x8x128xf32> to vector<8x128xf32>
    %c0_41 = arith.constant 0 : index
    %c2 = arith.constant 2 : index
    %c0_42 = arith.constant 0 : index
    %53 = vector.load %arg9[%c0_41, %c2, %c0_42] : memref<1x10x128xf32, #tpu.memory_space<vmem>>, vector<1x8x128xf32>
    %54 = vector.shape_cast %53 : vector<1x8x128xf32> to vector<8x128xf32>
    %55 = tpu.concatenate %50, %52, %54 in 1 : vector<8x128xf32>, vector<8x128xf32>, vector<8x128xf32> -> vector<8x384xf32>
    %c0_43 = arith.constant 0 : index
    %c0_44 = arith.constant 0 : index
    %56 = vector.load %arg6[%c0_43, %c0_44] : memref<384x128xf32, #tpu.memory_space<vmem>>, vector<384x128xf32>
    %cst_45 = arith.constant dense<0.000000e+00> : vector<8x128xf32>
    %57 = tpu.matmul %55, %56, %cst_45 {dimension_numbers = #tpu.dot_dimension_numbers<[1], [0], [0], [1], [0, 0, 1, 1], [], []>} : vector<8x384xf32>, vector<384x128xf32>, vector<8x128xf32> -> vector<8x128xf32>
    %58 = arith.addf %57, %10 : vector<8x128xf32>
    %c2_46 = arith.constant 2 : index
    %c0_47 = arith.constant 0 : index
    %59 = vector.load %arg7[%c2_46, %c0_47] : memref<4x128xf32, #tpu.memory_space<vmem>>, vector<1x128xf32>
    %60 = vector.broadcast %59 : vector<1x128xf32> to vector<8x128xf32>
    %61 = arith.addf %58, %60 : vector<8x128xf32>
    %cst_48 = arith.constant 0.000000e+00 : f32
    %62 = vector.broadcast %cst_48 : f32 to vector<8x128xf32>
    %63 = arith.maximumf %61, %62 : vector<8x128xf32>
    %64 = vector.shape_cast %63 : vector<8x128xf32> to vector<1x8x128xf32>
    %c0_49 = arith.constant 0 : index
    %c0_50 = arith.constant 0 : index
    %c0_51 = arith.constant 0 : index
    %65 = vector.load %arg8[%c0_49, %c0_50, %c0_51] : memref<1x8x128xf32, #tpu.memory_space<vmem>>, vector<1x8x128xf32>
    tpu.vector_store %arg8[%c0_49, %c0_50, %c0_51], %64 {strides = array<i32>} : memref<1x8x128xf32, #tpu.memory_space<vmem>>, vector<1x8x128xf32>,
    return
  }
  func.func @transform_0(%arg0: i32) -> (i32, i32, i32) {
    %c0_i32 = arith.constant 0 : i32
    %c0_i32_0 = arith.constant 0 : i32
    %c0_i32_1 = arith.constant 0 : i32
    return %arg0, %c0_i32, %c0_i32_0 : i32, i32, i32
  }
  func.func @transform_1(%arg0: i32) -> (i32, i32, i32) {
    %c0_i32 = arith.constant 0 : i32
    %c0_i32_0 = arith.constant 0 : i32
    %c0_i32_1 = arith.constant 0 : i32
    return %arg0, %c0_i32, %c0_i32_0 : i32, i32, i32
  }
  func.func @transform_2(%arg0: i32) -> (i32, i32) {
    %c0_i32 = arith.constant 0 : i32
    %c0_i32_0 = arith.constant 0 : i32
    %c0_i32_1 = arith.constant 0 : i32
    return %c0_i32, %c0_i32_0 : i32, i32
  }
  func.func @transform_3(%arg0: i32) -> (i32, i32) {
    %c0_i32 = arith.constant 0 : i32
    %c0_i32_0 = arith.constant 0 : i32
    %c0_i32_1 = arith.constant 0 : i32
    return %c0_i32, %c0_i32_0 : i32, i32
  }
  func.func @transform_4(%arg0: i32) -> (i32, i32) {
    %c0_i32 = arith.constant 0 : i32
    %c0_i32_0 = arith.constant 0 : i32
    %c0_i32_1 = arith.constant 0 : i32
    return %c0_i32, %c0_i32_0 : i32, i32
  }
  func.func @transform_5(%arg0: i32) -> (i32, i32) {
    %c0_i32 = arith.constant 0 : i32
    %c0_i32_0 = arith.constant 0 : i32
    %c0_i32_1 = arith.constant 0 : i32
    return %c0_i32, %c0_i32_0 : i32, i32
  }
  func.func @transform_6(%arg0: i32) -> (i32, i32) {
    %c0_i32 = arith.constant 0 : i32
    %c0_i32_0 = arith.constant 0 : i32
    %c0_i32_1 = arith.constant 0 : i32
    return %c0_i32, %c0_i32_0 : i32, i32
  }
  func.func @transform_7(%arg0: i32) -> (i32, i32, i32) {
    %c0_i32 = arith.constant 0 : i32
    %c0_i32_0 = arith.constant 0 : i32
    %c0_i32_1 = arith.constant 0 : i32
    return %arg0, %c0_i32, %c0_i32_0 : i32, i32, i32
  }
}

</mosaic_0001>

<llo_original>
// kernel: tpu_custom_call.1
$region0: #{tpu_custom_call.1}
  #allocation0 [shape = 'u32[]', space=smem, size = 0x4, offset = 0x4, fixed_abs, tag = 'smem constant byte address 0x4 - core index']
  #allocation1 [shape = 'u32[144,128]{1,0:T(1,128)}', space=vmem, size = 0x12000, scoped, tag = 'internal scratch']
  #allocation2 [shape = 'f32[1,10,128]{2,1,0:T(8,128)}', space=vmem, size = 0x2000, scoped, tag = 'scratch operand']
  %s0 = inlined_call_operand.hbm [shape: f32[2,8,64], index: 0, kind: input, shape index: {}]
  %s1 = inlined_call_operand.hbm [shape: f32[2,8,256], index: 1, kind: input, shape index: {}]
  %s2 = inlined_call_operand.hbm [shape: f32[64,288], index: 2, kind: input, shape index: {}]
  %s3 = inlined_call_operand.hbm [shape: f32[32,256], index: 3, kind: input, shape index: {}]
  %s4 = inlined_call_operand.hbm [shape: f32[256,128], index: 4, kind: input, shape index: {}]
  %s5 = inlined_call_operand.hbm [shape: f32[384,128], index: 5, kind: input, shape index: {}]
  %s6 = inlined_call_operand.vmem [shape: f32[4,128], index: 6, kind: input, shape index: {}]
  %s7 = inlined_call_operand.hbm [shape: f32[2,8,128], index: 7, kind: output, shape index: {}]
  %s8 = sld [smem:[#allocation0]]
  $region85: #{tpu_custom_call.1} parent=0
    _
  %s10 = ssub.s32 1, %s8
  %s11 = scalar_select 0, %s10, %s8
  $region1: #{tpu_custom_call.1} parent=0
    #allocation3 [shape = 'u8[8192]{0}', space=vmem, size = 0x2000, scoped, tag = 'input window, operand 0']
    #allocation4 [shape = 's32[2]{0}', space=sflag, size = 0x8, scoped, tag = 'scoped memory for tpu_custom_call.1']
    #allocation5 [shape = 's32[2]{0}', space=sflag, size = 0x8, scoped, tag = 'scoped memory for tpu_custom_call.1']
    #allocation6 [shape = 'u8[16384]{0}', space=vmem, size = 0x4000, scoped, tag = 'input window, operand 1']
    #allocation7 [shape = 's32[2]{0}', space=sflag, size = 0x8, scoped, tag = 'scoped memory for tpu_custom_call.1']
    #allocation8 [shape = 'u8[98304]{0}', space=vmem, size = 0x18000, scoped, tag = 'input window, operand 2, single buffered']
    #allocation9 [shape = 'u8[32768]{0}', space=vmem, size = 0x8000, scoped, tag = 'input window, operand 3, single buffered']
    #allocation10 [shape = 's32[1]{0}', space=sflag, size = 0x4, scoped, tag = 'scoped memory for tpu_custom_call.1']
    #allocation11 [shape = 'u8[131072]{0}', space=vmem, size = 0x20000, scoped, tag = 'input window, operand 4, single buffered']
    #allocation12 [shape = 'u8[196608]{0}', space=vmem, size = 0x30000, scoped, tag = 'input window, operand 5, single buffered']
    #allocation13 [shape = 's32[1]{0}', space=sflag, size = 0x4, scoped, tag = 'scoped memory for tpu_custom_call.1']
    #allocation14 [shape = 'u8[8192]{0}', space=vmem, size = 0x2000, scoped, tag = 'output window, operand 0']
    %12 = vsyncpa [#allocation4], 0
    %s13 = scalar_lea.sflag [#allocation4], 1
    %14 = vsyncpa %s13, 0
    %15 = vsyncpa [#allocation7], 0
    %s16 = scalar_lea.sflag [#allocation7], 1
    %17 = vsyncpa %s16, 0
    %18 = vsyncpa [#allocation10], 0
    %19 = vsyncpa [#allocation13], 0
    %20 = vsyncpa [#allocation5], 0
    %s21 = scalar_lea.sflag [#allocation5], 1
    %22 = vsyncpa %s21, 0
    loop: start=0, step=1, limit=4
    $region2: #{tpu_custom_call.1} parent=1 // loop_pre_header
      _
    $region3: #{tpu_custom_call.1} parent=1 // loop_header
      %s24 = sphi 0, %s28
      %p25 = scmp.ge.s32.totalorder %s24, 4
      %s34 = sphi 0, %s36
      %s37 = sphi 0, %s34
      %s38 = sphi 0, %s37
      %s54 = sphi 0, %s38
      %s60 = sphi 0, %s62
      %s63 = sphi 0, %s60
      %s64 = sphi 0, %s63
      %s80 = sphi 0, %s64
      %s84 = sphi 0, %s84
      %s86 = sphi 0, %s84
      %s87 = sphi 0, %s86
      %s101 = sphi 0, %s87
      %s105 = sphi 0, %s105
      %s107 = sphi 0, %s105
      %s108 = sphi 0, %s107
      %s122 = sphi 0, %s108
      %s126 = sphi 0, %s126
      %s128 = sphi 0, %s126
      %s129 = sphi 0, %s128
      %s143 = sphi 0, %s129
      %s147 = sphi 0, %s147
      %s149 = sphi 0, %s147
      %s150 = sphi 0, %s149
      %s164 = sphi 0, %s150
      %s168 = sphi 0, %s168
      %s170 = sphi 0, %s168
      %s171 = sphi 0, %s170
      %s185 = sphi 0, %s171
      %s191 = sphi 0, %s193
      %s194 = sphi 0, %s191
      %s195 = sphi 0, %s194
      %s211 = sphi 0, %s195
    $region4: #{tpu_custom_call.1} parent=1 // loop_header_branch
      %27 = sbr.rel (%p25) target = $region8
    $region5: #{tpu_custom_call.1} parent=1 // loop_body
      %s29 = ssub.s32 %s24, 1
      %s30 = ssub.s32 %s24, 2
      %s31 = sadd.s32 %s24, 1
      %s32 = ssub.s32 %s24, %s31
      %p33 = scmp.eq.s32.totalorder %s32, 0
      %s35 = sadd.s32 %s34, 1
      %s36 = scalar_select %p33, %s34, %s35
      %p39 = pneg %p33
      %p40 = scmp.eq.s32.totalorder %s24, 1
      %p41 = por %p39, %p40
      %p42 = scmp.ne.s32.totalorder %s34, %s37
      %p43 = scmp.eq.s32.totalorder %s24, 0
      %p44 = por %p42, %p43
      %p45 = scmp.ne.s32.totalorder %s34, %s37
      %p46 = scmp.eq.s32.totalorder %s29, 1
      %p47 = por %p45, %p46
      %p48 = scmp.ne.s32.totalorder %s37, %s38
      %p49 = scmp.eq.s32.totalorder %s29, 0
      %p50 = por %p48, %p49
      %p51 = scmp.ne.s32.totalorder %s37, %s38
      %p52 = scmp.eq.s32.totalorder %s30, 1
      %p53 = por %p51, %p52
      %p55 = scmp.ne.s32.totalorder %s38, %s54
      %p56 = scmp.eq.s32.totalorder %s30, 0
      %p57 = por %p55, %p56
      %s58 = ssub.s32 %s24, %s31
      %p59 = scmp.eq.s32.totalorder %s58, 0
      %s61 = sadd.s32 %s60, 1
      %s62 = scalar_select %p59, %s60, %s61
      %p65 = pneg %p59
      %p66 = scmp.eq.s32.totalorder %s24, 1
      %p67 = por %p65, %p66
      %p68 = scmp.ne.s32.totalorder %s60, %s63
      %p69 = scmp.eq.s32.totalorder %s24, 0
      %p70 = por %p68, %p69
      %p71 = scmp.ne.s32.totalorder %s60, %s63
      %p72 = scmp.eq.s32.totalorder %s29, 1
      %p73 = por %p71, %p72
      %p74 = scmp.ne.s32.totalorder %s63, %s64
      %p75 = scmp.eq.s32.totalorder %s29, 0
      %p76 = por %p74, %p75
      %p77 = scmp.ne.s32.totalorder %s63, %s64
      %p78 = scmp.eq.s32.totalorder %s30, 1
      %p79 = por %p77, %p78
      %p81 = scmp.ne.s32.totalorder %s64, %s80
      %p82 = scmp.eq.s32.totalorder %s30, 0
      %p83 = por %p81, %p82
      %s85 = sadd.s32 %s84, 1
      %p88 = scmp.eq.s32.totalorder %s24, 1
      %p89 = scmp.ne.s32.totalorder %s84, %s86
      %p90 = scmp.eq.s32.totalorder %s24, 0
      %p91 = por %p89, %p90
      %p92 = scmp.ne.s32.totalorder %s84, %s86
      %p93 = scmp.eq.s32.totalorder %s29, 1
      %p94 = por %p92, %p93
      %p95 = scmp.ne.s32.totalorder %s86, %s87
      %p96 = scmp.eq.s32.totalorder %s29, 0
      %p97 = por %p95, %p96
      %p98 = scmp.ne.s32.totalorder %s86, %s87
      %p99 = scmp.eq.s32.totalorder %s30, 1
      %p100 = por %p98, %p99
      %p102 = scmp.ne.s32.totalorder %s87, %s101
      %p103 = scmp.eq.s32.totalorder %s30, 0
      %p104 = por %p102, %p103
      %s106 = sadd.s32 %s105, 1
      %p109 = scmp.eq.s32.totalorder %s24, 1
      %p110 = scmp.ne.s32.totalorder %s105, %s107
      %p111 = scmp.eq.s32.totalorder %s24, 0
      %p112 = por %p110, %p111
      %p113 = scmp.ne.s32.totalorder %s105, %s107
      %p114 = scmp.eq.s32.totalorder %s29, 1
      %p115 = por %p113, %p114
      %p116 = scmp.ne.s32.totalorder %s107, %s108
      %p117 = scmp.eq.s32.totalorder %s29, 0
      %p118 = por %p116, %p117
      %p119 = scmp.ne.s32.totalorder %s107, %s108
      %p120 = scmp.eq.s32.totalorder %s30, 1
      %p121 = por %p119, %p120
      %p123 = scmp.ne.s32.totalorder %s108, %s122
      %p124 = scmp.eq.s32.totalorder %s30, 0
      %p125 = por %p123, %p124
      %s127 = sadd.s32 %s126, 1
      %p130 = scmp.eq.s32.totalorder %s24, 1
      %p131 = scmp.ne.s32.totalorder %s126, %s128
      %p132 = scmp.eq.s32.totalorder %s24, 0
      %p133 = por %p131, %p132
      %p134 = scmp.ne.s32.totalorder %s126, %s128
      %p135 = scmp.eq.s32.totalorder %s29, 1
      %p136 = por %p134, %p135
      %p137 = scmp.ne.s32.totalorder %s128, %s129
      %p138 = scmp.eq.s32.totalorder %s29, 0
      %p139 = por %p137, %p138
      %p140 = scmp.ne.s32.totalorder %s128, %s129
      %p141 = scmp.eq.s32.totalorder %s30, 1
      %p142 = por %p140, %p141
      %p144 = scmp.ne.s32.totalorder %s129, %s143
      %p145 = scmp.eq.s32.totalorder %s30, 0
      %p146 = por %p144, %p145
      %s148 = sadd.s32 %s147, 1
      %p151 = scmp.eq.s32.totalorder %s24, 1
      %p152 = scmp.ne.s32.totalorder %s147, %s149
      %p153 = scmp.eq.s32.totalorder %s24, 0
      %p154 = por %p152, %p153
      %p155 = scmp.ne.s32.totalorder %s147, %s149
      %p156 = scmp.eq.s32.totalorder %s29, 1
      %p157 = por %p155, %p156
      %p158 = scmp.ne.s32.totalorder %s149, %s150
      %p159 = scmp.eq.s32.totalorder %s29, 0
      %p160 = por %p158, %p159
      %p161 = scmp.ne.s32.totalorder %s149, %s150
      %p162 = scmp.eq.s32.totalorder %s30, 1
      %p163 = por %p161, %p162
      %p165 = scmp.ne.s32.totalorder %s150, %s164
      %p166 = scmp.eq.s32.totalorder %s30, 0
      %p167 = por %p165, %p166
      %s169 = sadd.s32 %s168, 1
      %p172 = scmp.eq.s32.totalorder %s24, 1
      %p173 = scmp.ne.s32.totalorder %s168, %s170
      %p174 = scmp.eq.s32.totalorder %s24, 0
      %p175 = por %p173, %p174
      %p176 = scmp.ne.s32.totalorder %s168, %s170
      %p177 = scmp.eq.s32.totalorder %s29, 1
      %p178 = por %p176, %p177
      %p179 = scmp.ne.s32.totalorder %s170, %s171
      %p180 = scmp.eq.s32.totalorder %s29, 0
      %p181 = por %p179, %p180
      %p182 = scmp.ne.s32.totalorder %s170, %s171
      %p183 = scmp.eq.s32.totalorder %s30, 1
      %p184 = por %p182, %p183
      %p186 = scmp.ne.s32.totalorder %s171, %s185
      %p187 = scmp.eq.s32.totalorder %s30, 0
      %p188 = por %p186, %p187
      %s189 = ssub.s32 %s24, %s31
      %p190 = scmp.eq.s32.totalorder %s189, 0
      %s192 = sadd.s32 %s191, 1
      %s193 = scalar_select %p190, %s191, %s192
      %p196 = pneg %p190
      %p197 = scmp.eq.s32.totalorder %s24, 1
      %p198 = por %p196, %p197
      %p199 = scmp.ne.s32.totalorder %s191, %s194
      %p200 = scmp.eq.s32.totalorder %s24, 0
      %p201 = por %p199, %p200
      %p202 = scmp.ne.s32.totalorder %s191, %s194
      %p203 = scmp.eq.s32.totalorder %s29, 1
      %p204 = por %p202, %p203
      %p205 = scmp.ne.s32.totalorder %s194, %s195
      %p206 = scmp.eq.s32.totalorder %s29, 0
      %p207 = por %p205, %p206
      %p208 = scmp.ne.s32.totalorder %s194, %s195
      %p209 = scmp.eq.s32.totalorder %s30, 1
      %p210 = por %p208, %p209
      %p212 = scmp.ne.s32.totalorder %s195, %s211
      %p213 = scmp.eq.s32.totalorder %s30, 0
      %p214 = por %p212, %p213
      %p215 = scmp.le.s32.totalorder 1, %s24
      %p216 = scmp.lt.s32.totalorder %s24, 3
      %p217 = pnand %p215, %p216
      %p218 = pneg %p217
      // Predicated region
      $region9: #{tpu_custom_call.1} parent=5 // pred_check
        _
      $region10: #{tpu_custom_call.1} parent=5 // pred_check_branch
        %220 = sbr.rel (%p217) target = $region12
      $region11: #{tpu_custom_call.1} parent=5 // pred_region
        %s221 = ssub.s32 %s24, 1
        // Predicated region
        $region13: #{tpu_custom_call.1} parent=11 // pred_check
          %p222 = pneg %p97
        $region14: #{tpu_custom_call.1} parent=11 // pred_check_branch
          %224 = sbr.rel (%p222) target = $region16
        $region15: #{tpu_custom_call.1} parent=11 // pred_region
          %s226 = ssub.s32 3072, 3072
          %227 = vsyncadd [#allocation7], %s226
          %s228 = sshll.u32 [#allocation8], 4
          %s229 = int_to_ptr.vmem [resolvable:$true] %s228
          %234 = dma.hbm_to_vmem [thread:$0]  %s2, 3072, %s229, [#allocation7], 384, 384, 24
        $region16: #{tpu_custom_call.1} parent=11 // pred_fallthru
          _
        // Predicated region
        $region17: #{tpu_custom_call.1} parent=11 // pred_check
          %p235 = pneg %p118
        $region18: #{tpu_custom_call.1} parent=11 // pred_check_branch
          %237 = sbr.rel (%p235) target = $region20
        $region19: #{tpu_custom_call.1} parent=11 // pred_region
          %s239 = ssub.s32 1024, 1024
          %240 = vsyncadd [#allocation10], %s239
          %s241 = sshll.u32 [#allocation9], 4
          %s242 = int_to_ptr.vmem [resolvable:$true] %s241
          %247 = dma.hbm_to_vmem [thread:$0]  %s3, 1024, %s242, [#allocation10], 256, 256, 16
        $region20: #{tpu_custom_call.1} parent=11 // pred_fallthru
          _
        // Predicated region
        $region21: #{tpu_custom_call.1} parent=11 // pred_check
          %p248 = pneg %p139
        $region22: #{tpu_custom_call.1} parent=11 // pred_check_branch
          %250 = sbr.rel (%p248) target = $region24
        $region23: #{tpu_custom_call.1} parent=11 // pred_region
          %s252 = ssub.s32 4096, 4096
          %253 = vsyncadd [#allocation10], %s252
          %s254 = sshll.u32 [#allocation11], 4
          %s255 = int_to_ptr.vmem [resolvable:$true] %s254
          %260 = dma.hbm_to_vmem [thread:$0]  %s4, 4096, %s255, [#allocation10], 128, 128, 8
        $region24: #{tpu_custom_call.1} parent=11 // pred_fallthru
          _
        // Predicated region
        $region25: #{tpu_custom_call.1} parent=11 // pred_check
          %p261 = pneg %p160
        $region26: #{tpu_custom_call.1} parent=11 // pred_check_branch
          %263 = sbr.rel (%p261) target = $region28
        $region27: #{tpu_custom_call.1} parent=11 // pred_region
          %s265 = ssub.s32 6144, 6144
          %266 = vsyncadd [#allocation13], %s265
          %s267 = sshll.u32 [#allocation12], 4
          %s268 = int_to_ptr.vmem [resolvable:$true] %s267
          %273 = dma.hbm_to_vmem [thread:$0]  %s5, 6144, %s268, [#allocation13], 128, 128, 8
        $region28: #{tpu_custom_call.1} parent=11 // pred_fallthru
          _
        // Predicated region
        $region29: #{tpu_custom_call.1} parent=11 // pred_check
          %p274 = pneg %p181
        $region30: #{tpu_custom_call.1} parent=11 // pred_check_branch
          %276 = sbr.rel (%p274) target = $region32
        $region31: #{tpu_custom_call.1} parent=11 // pred_region
          _
        $region32: #{tpu_custom_call.1} parent=11 // pred_fallthru
          _
      $region12: #{tpu_custom_call.1} parent=5 // pred_fallthru
        _
      %p277 = scmp.lt.s32.totalorder %s24, 2
      // Predicated region
      $region33: #{tpu_custom_call.1} parent=5 // pred_check
        %p278 = pneg %p277
      $region34: #{tpu_custom_call.1} parent=5 // pred_check_branch
        %280 = sbr.rel (%p278) target = $region36
      $region35: #{tpu_custom_call.1} parent=5 // pred_region
        // Predicated region
        $region37: #{tpu_custom_call.1} parent=35 // pred_check
          %p281 = pneg %p44
        $region38: #{tpu_custom_call.1} parent=35 // pred_check_branch
          %283 = sbr.rel (%p281) target = $region40
        $region39: #{tpu_custom_call.1} parent=35 // pred_region
          %s284 = sand.u32 %s34, 1
          %s285 = scalar_lea.sflag [#allocation4], %s284
          %s286 = sand.u32 %s34, 1
          %s287 = smul.addr %s286, 8
          %s288 = scalar_lea.vmem [#allocation3], %s287
          %s290 = ssub.s32 128, 128
          %291 = vsyncadd %s285, %s290
          %s292 = smul.addr %s24, 128
          %s293 = scalar_lea.hbm %s0, %s292
          %s295 = sshll.u32 %s288, 4
          %s296 = int_to_ptr.vmem [resolvable:$true] %s295
          %298 = dma.hbm_to_vmem [thread:$0]  %s293, 128, %s296, %s285
        $region40: #{tpu_custom_call.1} parent=35 // pred_fallthru
          _
        // Predicated region
        $region41: #{tpu_custom_call.1} parent=35 // pred_check
          %p299 = pneg %p70
        $region42: #{tpu_custom_call.1} parent=35 // pred_check_branch
          %301 = sbr.rel (%p299) target = $region44
        $region43: #{tpu_custom_call.1} parent=35 // pred_region
          %s302 = sand.u32 %s24, 1
          %s303 = scalar_lea.sflag [#allocation7], %s302
          %s304 = sand.u32 %s60, 1
          %s305 = smul.addr %s304, 16
          %s306 = scalar_lea.vmem [#allocation6], %s305
          %s308 = ssub.s32 256, 256
          %309 = vsyncadd %s303, %s308
          %s310 = smul.addr %s24, 2
          %s311 = smul.addr %s310, 128
          %s312 = scalar_lea.hbm %s1, %s311
          %s314 = sshll.u32 %s306, 4
          %s315 = int_to_ptr.vmem [resolvable:$true] %s314
          %317 = dma.hbm_to_vmem [thread:$0]  %s312, 256, %s315, %s303
        $region44: #{tpu_custom_call.1} parent=35 // pred_fallthru
          _
      $region36: #{tpu_custom_call.1} parent=5 // pred_fallthru
        _
      %p318 = scmp.le.s32.totalorder 1, %s24
      %p319 = scmp.lt.s32.totalorder %s24, 3
      %p320 = pnand %p318, %p319
      %p321 = pneg %p320
      // Predicated region
      $region45: #{tpu_custom_call.1} parent=5 // pred_check
        _
      $region46: #{tpu_custom_call.1} parent=5 // pred_check_branch
        %323 = sbr.rel (%p320) target = $region48
      $region47: #{tpu_custom_call.1} parent=5 // pred_region
        %s324 = ssub.s32 %s24, 1
        %s325 = sand.u32 %s37, 1
        %s326 = scalar_lea.sflag [#allocation4], %s325
        %s327 = sand.u32 %s37, 1
        %s328 = smul.addr %s327, 8
        %s329 = scalar_lea.vmem [#allocation3], %s328
        // Predicated region
        $region49: #{tpu_custom_call.1} parent=47 // pred_check
          %p330 = pneg %p50
        $region50: #{tpu_custom_call.1} parent=47 // pred_check_branch
          %332 = sbr.rel (%p330) target = $region52
        $region51: #{tpu_custom_call.1} parent=47 // pred_region
          %333 = dma.done %s326, 128
        $region52: #{tpu_custom_call.1} parent=47 // pred_fallthru
          _
        %s334 = sand.u32 %s29, 1
        %s335 = scalar_lea.sflag [#allocation7], %s334
        %s336 = sand.u32 %s63, 1
        %s337 = smul.addr %s336, 16
        %s338 = scalar_lea.vmem [#allocation6], %s337
        // Predicated region
        $region53: #{tpu_custom_call.1} parent=47 // pred_check
          %p339 = pneg %p76
        $region54: #{tpu_custom_call.1} parent=47 // pred_check_branch
          %341 = sbr.rel (%p339) target = $region56
        $region55: #{tpu_custom_call.1} parent=47 // pred_region
          %342 = dma.done %s335, 256
        $region56: #{tpu_custom_call.1} parent=47 // pred_fallthru
          _
        // Predicated region
        $region57: #{tpu_custom_call.1} parent=47 // pred_check
          %p343 = pneg %p97
        $region58: #{tpu_custom_call.1} parent=47 // pred_check_branch
          %345 = sbr.rel (%p343) target = $region60
        $region59: #{tpu_custom_call.1} parent=47 // pred_region
          %346 = dma.done [#allocation7], 3072
        $region60: #{tpu_custom_call.1} parent=47 // pred_fallthru
          _
        // Predicated region
        $region61: #{tpu_custom_call.1} parent=47 // pred_check
          %p347 = pneg %p118
        $region62: #{tpu_custom_call.1} parent=47 // pred_check_branch
          %349 = sbr.rel (%p347) target = $region64
        $region63: #{tpu_custom_call.1} parent=47 // pred_region
          %350 = dma.done [#allocation10], 1024
        $region64: #{tpu_custom_call.1} parent=47 // pred_fallthru
          _
        // Predicated region
        $region65: #{tpu_custom_call.1} parent=47 // pred_check
          %p351 = pneg %p139
        $region66: #{tpu_custom_call.1} parent=47 // pred_check_branch
          %353 = sbr.rel (%p351) target = $region68
        $region67: #{tpu_custom_call.1} parent=47 // pred_region
          %354 = dma.done [#allocation10], 4096
        $region68: #{tpu_custom_call.1} parent=47 // pred_fallthru
          _
        // Predicated region
        $region69: #{tpu_custom_call.1} parent=47 // pred_check
          %p355 = pneg %p160
        $region70: #{tpu_custom_call.1} parent=47 // pred_check_branch
          %357 = sbr.rel (%p355) target = $region72
        $region71: #{tpu_custom_call.1} parent=47 // pred_region
          %358 = dma.done [#allocation13], 6144
        $region72: #{tpu_custom_call.1} parent=47 // pred_fallthru
          _
        %s359 = sand.u32 %s37, 1
        %s360 = scalar_lea.sflag [#allocation4], %s359
        %s361 = sand.u32 %s37, 1
        %s362 = smul.addr %s361, 8
        %s363 = scalar_lea.vmem [#allocation3], %s362
        %p364 = pneg %p50
        %p365 = pneg %p47
        %s366 = sand.u32 %s29, 1
        %s367 = scalar_lea.sflag [#allocation7], %s366
        %s368 = sand.u32 %s63, 1
        %s369 = smul.addr %s368, 16
        %s370 = scalar_lea.vmem [#allocation6], %s369
        %p371 = pneg %p76
        %p372 = pneg %p73
        %p373 = pneg %p97
        %p374 = pneg %p94
        %p375 = pneg %p118
        %p376 = pneg %p115
        %p377 = pneg %p139
        %p378 = pneg %p136
        %p379 = pneg %p160
        %p380 = pneg %p157
        %p381 = pneg %p181
        %p382 = pneg %p178
        %p383 = pneg %p207
        %p384 = pneg %p204
        %s385 = sand.u32 %s194, 1
        %s386 = scalar_lea.sflag [#allocation5], %s385
        %s387 = sand.u32 %s194, 1
        %s388 = smul.addr %s387, 8
        %s389 = scalar_lea.vmem [#allocation14], %s388
        %v390 = vld [vmem:[%s329] sm:$0xff]
        %v391 = vld [vmem:[%s338] sm:$0xff]
        %v392 = vld [vmem:[%s338 + $0x8] sm:$0xff]
        %v393 = vld [vmem:[#allocation8] sm:$0xff]
        %v394 = vld [vmem:[#allocation8 + $0x8] sm:$0xff]
        %v395 = vld [vmem:[#allocation8 + $0x10] sm:$0xff]
        %v396 = vld [vmem:[#allocation8 + $0x18] sm:$0xff]
        %v397 = vld [vmem:[#allocation8 + $0x20] sm:$0xff]
        %v398 = vld [vmem:[#allocation8 + $0x28] sm:$0xff]
        %v399 = vld [vmem:[#allocation8 + $0x30] sm:$0xff]
        %v400 = vld [vmem:[#allocation8 + $0x38] sm:$0xff]
        %v401 = vld [vmem:[#allocation8 + $0x40] sm:$0xff]
        %v402 = vld [vmem:[#allocation8 + $0x48] sm:$0xff]
        %v403 = vld [vmem:[#allocation8 + $0x50] sm:$0xff]
        %v404 = vld [vmem:[#allocation8 + $0x58] sm:$0xff]
        %v405 = vld [vmem:[#allocation8 + $0x60] sm:$0xff]
        %v406 = vld [vmem:[#allocation8 + $0x68] sm:$0xff]
        %v407 = vld [vmem:[#allocation8 + $0x70] sm:$0xff]
        %v408 = vld [vmem:[#allocation8 + $0x78] sm:$0xff]
        %v409 = vld [vmem:[#allocation8 + $0x80] sm:$0xff]
        %v410 = vld [vmem:[#allocation8 + $0x88] sm:$0xff]
        %v411 = vld [vmem:[#allocation8 + $0x90] sm:$0xff]
        %v412 = vld [vmem:[#allocation8 + $0x98] sm:$0xff]
        %v413 = vld [vmem:[#allocation8 + $0xa0] sm:$0xff]
        %v414 = vld [vmem:[#allocation8 + $0xa8] sm:$0xff]
        %v415 = vld [vmem:[#allocation8 + $0xb0] sm:$0xff]
        %v416 = vld [vmem:[#allocation8 + $0xb8] sm:$0xff]
        %vm417 = vcmask 523264
        %v419 = vsel %vm417, %v390, 0
        %421 = vmatprep.subr.mxu0 %v394
        %422 = vmatpush1.msra.mxu0 %v393
        %423 = vmatprep.subr.mxu0 %v397
        %424 = vmatpush1.msra.mxu0 %v396
        %425 = vmatprep.subr.mxu0 %v400
        %426 = vmatpush1.msra.mxu0 %v399
        %427 = vmatprep.subr.mxu0 %v403
        %428 = vmatpush1.msra.mxu0 %v402
        %429 = vmatprep.subr.mxu0 %v406
        %430 = vmatpush1.msra.mxu0 %v405
        %431 = vmatprep.subr.mxu0 %v409
        %432 = vmatpush1.msra.mxu0 %v408
        %433 = vmatprep.subr.mxu0 %v412
        %434 = vmatpush1.msra.mxu0 %v411
        %435 = vmatprep.subr.mxu0 %v415
        %436 = vmatpush1.msra.mxu0 %v414
        %437 = vmatprep.subr.mxu0 0.0
        %438 = vmatpush1.msra.mxu0 0.0
        %439 = vmatprep.subr.mxu0 0.0
        %440 = vmatpush1.msra.mxu0 0.0
        %441 = vmatprep.subr.mxu0 0.0
        %442 = vmatpush1.msra.mxu0 0.0
        %443 = vmatprep.subr.mxu0 0.0
        %444 = vmatpush1.msra.mxu0 0.0
        %445 = vmatprep.subr.mxu0 0.0
        %446 = vmatpush1.msra.mxu0 0.0
        %447 = vmatprep.subr.mxu0 0.0
        %448 = vmatpush1.msra.mxu0 0.0
        %449 = vmatprep.subr.mxu0 0.0
        %450 = vmatpush1.msra.mxu0 0.0
        %451 = vmatprep.subr.mxu0 0.0
        %452 = vmatpush1.msra.mxu0 0.0
        %453 = vmatprep.subr.mxu0 0.0
        %454 = vmatpush1.msra.mxu0 0.0
        %455 = vmatprep.subr.mxu0 0.0
        %456 = vmatpush1.msra.mxu0 0.0
        %457 = vmatprep.subr.mxu0 0.0
        %458 = vmatpush1.msra.mxu0 0.0
        %459 = vmatprep.subr.mxu0 0.0
        %460 = vmatpush1.msra.mxu0 0.0
        %461 = vmatprep.subr.mxu0 0.0
        %462 = vmatpush1.msra.mxu0 0.0
        %463 = vmatprep.subr.mxu0 0.0
        %464 = vmatpush1.msra.mxu0 0.0
        %465 = vmatprep.subr.mxu0 0.0
        %466 = vmatpush1.msra.mxu0 0.0
        %467 = vmatprep.subr.mxu0 0.0
        %468 = vmatpush1.msra.mxu0 0.0
        %469 = vmatprep.subr.mxu0 0.0
        %470 = vmatpush1.msra.mxu0 0.0
        %471 = vmatprep.subr.mxu0 0.0
        %472 = vmatpush1.msra.mxu0 0.0
        %473 = vmatprep.subr.mxu0 0.0
        %474 = vmatpush1.msra.mxu0 0.0
        %475 = vmatprep.subr.mxu0 0.0
        %476 = vmatpush1.msra.mxu0 0.0
        %477 = vmatprep.subr.mxu0 0.0
        %478 = vmatpush1.msra.mxu0 0.0
        %479 = vmatprep.subr.mxu0 0.0
        %480 = vmatpush1.msra.mxu0 0.0
        %481 = vmatprep.subr.mxu0 0.0
        %482 = vmatpush1.msra.mxu0 0.0
        %483 = vmatprep.subr.mxu0 0.0
        %484 = vmatpush1.msra.mxu0 0.0
        %485 = vmatprep.mubr.f32.mxu0 0.0
        %486 = vmatmul.mubr.f32.gmra.mrb[0].mxu0 %v419
        %v487 = vpop.f32.mrb[0].mxu0
        %v488 = vadd.f32 0.0, %v487
        %v489 = vpop.f32.mrb[0].mxu0
        %v490 = vadd.f32 0.0, %v489
        %491 = vdwg.mxu0
        %492 = vmatprep.subr.mxu0 0.0
        %493 = vmatpush1.msra.mxu0 %v395
        %494 = vmatprep.subr.mxu0 0.0
        %495 = vmatpush1.msra.mxu0 %v398
        %496 = vmatprep.subr.mxu0 0.0
        %497 = vmatpush1.msra.mxu0 %v401
        %498 = vmatprep.subr.mxu0 0.0
        %499 = vmatpush1.msra.mxu0 %v404
        %500 = vmatprep.subr.mxu0 0.0
        %501 = vmatpush1.msra.mxu0 %v407
        %502 = vmatprep.subr.mxu0 0.0
        %503 = vmatpush1.msra.mxu0 %v410
        %504 = vmatprep.subr.mxu0 0.0
        %505 = vmatpush1.msra.mxu0 %v413
        %506 = vmatprep.subr.mxu0 0.0
        %507 = vmatpush1.msra.mxu0 %v416
        %508 = vmatprep.subr.mxu0 0.0
        %509 = vmatpush1.msra.mxu0 0.0
        %510 = vmatprep.subr.mxu0 0.0
        %511 = vmatpush1.msra.mxu0 0.0
        %512 = vmatprep.subr.mxu0 0.0
        %513 = vmatpush1.msra.mxu0 0.0
        %514 = vmatprep.subr.mxu0 0.0
        %515 = vmatpush1.msra.mxu0 0.0
        %516 = vmatprep.subr.mxu0 0.0
        %517 = vmatpush1.msra.mxu0 0.0
        %518 = vmatprep.subr.mxu0 0.0
        %519 = vmatpush1.msra.mxu0 0.0
        %520 = vmatprep.subr.mxu0 0.0
        %521 = vmatpush1.msra.mxu0 0.0
        %522 = vmatprep.subr.mxu0 0.0
        %523 = vmatpush1.msra.mxu0 0.0
        %524 = vmatprep.subr.mxu0 0.0
        %525 = vmatpush1.msra.mxu0 0.0
        %526 = vmatprep.subr.mxu0 0.0
        %527 = vmatpush1.msra.mxu0 0.0
        %528 = vmatprep.subr.mxu0 0.0
        %529 = vmatpush1.msra.mxu0 0.0
        %530 = vmatprep.subr.mxu0 0.0
        %531 = vmatpush1.msra.mxu0 0.0
        %532 = vmatprep.subr.mxu0 0.0
        %533 = vmatpush1.msra.mxu0 0.0
        %534 = vmatprep.subr.mxu0 0.0
        %535 = vmatpush1.msra.mxu0 0.0
        %536 = vmatprep.subr.mxu0 0.0
        %537 = vmatpush1.msra.mxu0 0.0
        %538 = vmatprep.subr.mxu0 0.0
        %539 = vmatpush1.msra.mxu0 0.0
        %540 = vmatprep.subr.mxu0 0.0
        %541 = vmatpush1.msra.mxu0 0.0
        %542 = vmatprep.subr.mxu0 0.0
        %543 = vmatpush1.msra.mxu0 0.0
        %544 = vmatprep.subr.mxu0 0.0
        %545 = vmatpush1.msra.mxu0 0.0
        %546 = vmatprep.subr.mxu0 0.0
        %547 = vmatpush1.msra.mxu0 0.0
        %548 = vmatprep.subr.mxu0 0.0
        %549 = vmatpush1.msra.mxu0 0.0
        %550 = vmatprep.subr.mxu0 0.0
        %551 = vmatpush1.msra.mxu0 0.0
        %552 = vmatprep.subr.mxu0 0.0
        %553 = vmatpush1.msra.mxu0 0.0
        %554 = vmatprep.subr.mxu0 0.0
        %555 = vmatpush1.msra.mxu0 0.0
        %556 = vmatprep.mubr.f32.mxu0 0.0
        %557 = vmatmul.mubr.f32.gmra.mrb[0].mxu0 %v419
        %v558 = vpop.f32.mrb[0].mxu0
        %v559 = vadd.f32 0.0, %v558
        %v560 = vpop.f32.mrb[0].mxu0
        %561 = vdwg.mxu0
        %v562 = vld [vmem:[%s6] sm:$0x1]
        %v563 = vlaneseq
        %v564 = vshrl.u32 %v563, 7
        %v565 = vsub.s32 0, %v564
        %v566 = vrot.slane %v562, %v565
        %v567 = vadd.f32 %v488, %v566
        %v568 = vld [vmem:[%s6 + $0x3] sm:$0x1]
        %v569 = vld [vmem:[#allocation9] sm:$0xff]
        %v570 = vld [vmem:[#allocation9 + $0x8] sm:$0xff]
        %v571 = vld [vmem:[#allocation9 + $0x10] sm:$0xff]
        %v572 = vld [vmem:[#allocation9 + $0x18] sm:$0xff]
        %v573 = vld [vmem:[#allocation9 + $0x20] sm:$0xff]
        %v574 = vld [vmem:[#allocation9 + $0x28] sm:$0xff]
        %v575 = vld [vmem:[#allocation9 + $0x30] sm:$0xff]
        %v576 = vld [vmem:[#allocation9 + $0x38] sm:$0xff]
        %s578 = vtos %v568
        %v579 = vstv %s578
        %vm581 = vcmask 261120
        %v583 = vsel %vm581, %v559, 0
        %585 = vmatprep.subr.mxu0 %v570
        %586 = vmatpush1.msra.mxu0 %v569
        %587 = vmatprep.subr.mxu0 %v572
        %588 = vmatpush1.msra.mxu0 %v571
        %589 = vmatprep.subr.mxu0 %v574
        %590 = vmatpush1.msra.mxu0 %v573
        %591 = vmatprep.subr.mxu0 %v576
        %592 = vmatpush1.msra.mxu0 %v575
        %593 = vmatprep.subr.mxu0 0.0
        %594 = vmatpush1.msra.mxu0 0.0
        %595 = vmatprep.subr.mxu0 0.0
        %596 = vmatpush1.msra.mxu0 0.0
        %597 = vmatprep.subr.mxu0 0.0
        %598 = vmatpush1.msra.mxu0 0.0
        %599 = vmatprep.subr.mxu0 0.0
        %600 = vmatpush1.msra.mxu0 0.0
        %601 = vmatprep.subr.mxu0 0.0
        %602 = vmatpush1.msra.mxu0 0.0
        %603 = vmatprep.subr.mxu0 0.0
        %604 = vmatpush1.msra.mxu0 0.0
        %605 = vmatprep.subr.mxu0 0.0
        %606 = vmatpush1.msra.mxu0 0.0
        %607 = vmatprep.subr.mxu0 0.0
        %608 = vmatpush1.msra.mxu0 0.0
        %609 = vmatprep.subr.mxu0 0.0
        %610 = vmatpush1.msra.mxu0 0.0
        %611 = vmatprep.subr.mxu0 0.0
        %612 = vmatpush1.msra.mxu0 0.0
        %613 = vmatprep.subr.mxu0 0.0
        %614 = vmatpush1.msra.mxu0 0.0
        %615 = vmatprep.subr.mxu0 0.0
        %616 = vmatpush1.msra.mxu0 0.0
        %617 = vmatprep.subr.mxu0 0.0
        %618 = vmatpush1.msra.mxu0 0.0
        %619 = vmatprep.subr.mxu0 0.0
        %620 = vmatpush1.msra.mxu0 0.0
        %621 = vmatprep.subr.mxu0 0.0
        %622 = vmatpush1.msra.mxu0 0.0
        %623 = vmatprep.subr.mxu0 0.0
        %624 = vmatpush1.msra.mxu0 0.0
        %625 = vmatprep.subr.mxu0 0.0
        %626 = vmatpush1.msra.mxu0 0.0
        %627 = vmatprep.subr.mxu0 0.0
        %628 = vmatpush1.msra.mxu0 0.0
        %629 = vmatprep.subr.mxu0 0.0
        %630 = vmatpush1.msra.mxu0 0.0
        %631 = vmatprep.subr.mxu0 0.0
        %632 = vmatpush1.msra.mxu0 0.0
        %633 = vmatprep.subr.mxu0 0.0
        %634 = vmatpush1.msra.mxu0 0.0
        %635 = vmatprep.subr.mxu0 0.0
        %636 = vmatpush1.msra.mxu0 0.0
        %637 = vmatprep.subr.mxu0 0.0
        %638 = vmatpush1.msra.mxu0 0.0
        %639 = vmatprep.subr.mxu0 0.0
        %640 = vmatpush1.msra.mxu0 0.0
        %641 = vmatprep.subr.mxu0 0.0
        %642 = vmatpush1.msra.mxu0 0.0
        %643 = vmatprep.subr.mxu0 0.0
        %644 = vmatpush1.msra.mxu0 0.0
        %645 = vmatprep.subr.mxu0 0.0
        %646 = vmatpush1.msra.mxu0 0.0
        %647 = vmatprep.subr.mxu0 0.0
        %648 = vmatpush1.msra.mxu0 0.0
        %649 = vmatprep.mubr.f32.mxu0 0.0
        %650 = vmatmul.mubr.f32.gmra.mrb[0].mxu0 %v583
        %v651 = vpop.f32.mrb[0].mxu0
        %v652 = vadd.f32 %v579, %v651
        %v653 = vpop.f32.mrb[0].mxu0
        %v654 = vadd.f32 %v579, %v653
        %655 = vdwg.mxu0
        %vm656 = vcmp.gt.f32.partialorder %v652, 0.0
        %vm657 = vcmp.gt.f32.partialorder %v654, 0.0
        %v658 = vmul.f32 %v652, 0.01
        %v659 = vmul.f32 %v654, 0.01
        %v660 = vsel %vm656, %v652, %v658
        %v661 = vsel %vm657, %v654, %v659
        %v662 = vmax.f32 %v660, %v661
        %663 = vmax.xlane.f32.xlu0 %v662
        %v664 = vpop.xlane.xlu0 %663
        %v665 = vsub.f32 %v660, %v664
        %v666 = vsub.f32 %v661, %v664
        %v667 = vmul.f32 %v665, 1.442695
        %v668 = vpow.pop %v667
        %v669 = vmul.f32 %v666, 1.442695
        %v670 = vpow.pop %v669
        %v671 = vld [vmem:[#allocation11] sm:$0xff]
        %v672 = vld [vmem:[#allocation11 + $0x8] sm:$0xff]
        %v673 = vld [vmem:[#allocation11 + $0x10] sm:$0xff]
        %v674 = vld [vmem:[#allocation11 + $0x18] sm:$0xff]
        %v675 = vld [vmem:[#allocation11 + $0x20] sm:$0xff]
        %v676 = vld [vmem:[#allocation11 + $0x28] sm:$0xff]
        %v677 = vld [vmem:[#allocation11 + $0x30] sm:$0xff]
        %v678 = vld [vmem:[#allocation11 + $0x38] sm:$0xff]
        %v679 = vld [vmem:[#allocation11 + $0x40] sm:$0xff]
        %v680 = vld [vmem:[#allocation11 + $0x48] sm:$0xff]
        %v681 = vld [vmem:[#allocation11 + $0x50] sm:$0xff]
        %v682 = vld [vmem:[#allocation11 + $0x58] sm:$0xff]
        %v683 = vld [vmem:[#allocation11 + $0x60] sm:$0xff]
        %v684 = vld [vmem:[#allocation11 + $0x68] sm:$0xff]
        %v685 = vld [vmem:[#allocation11 + $0x70] sm:$0xff]
        %v686 = vld [vmem:[#allocation11 + $0x78] sm:$0xff]
        %v687 = vld [vmem:[#allocation11 + $0x80] sm:$0xff]
        %v688 = vld [vmem:[#allocation11 + $0x88] sm:$0xff]
        %v689 = vld [vmem:[#allocation11 + $0x90] sm:$0xff]
        %v690 = vld [vmem:[#allocation11 + $0x98] sm:$0xff]
        %v691 = vld [vmem:[#allocation11 + $0xa0] sm:$0xff]
        %v692 = vld [vmem:[#allocation11 + $0xa8] sm:$0xff]
        %v693 = vld [vmem:[#allocation11 + $0xb0] sm:$0xff]
        %v694 = vld [vmem:[#allocation11 + $0xb8] sm:$0xff]
        %v695 = vld [vmem:[#allocation11 + $0xc0] sm:$0xff]
        %v696 = vld [vmem:[#allocation11 + $0xc8] sm:$0xff]
        %v697 = vld [vmem:[#allocation11 + $0xd0] sm:$0xff]
        %v698 = vld [vmem:[#allocation11 + $0xd8] sm:$0xff]
        %v699 = vld [vmem:[#allocation11 + $0xe0] sm:$0xff]
        %v700 = vld [vmem:[#allocation11 + $0xe8] sm:$0xff]
        %v701 = vld [vmem:[#allocation11 + $0xf0] sm:$0xff]
        %v702 = vld [vmem:[#allocation11 + $0xf8] sm:$0xff]
        %703 = vmatprep.subr.mxu0 0.0
        %704 = vmatpush1.msra.mxu0 %v671
        %705 = vmatprep.subr.mxu0 0.0
        %706 = vmatpush1.msra.mxu0 %v672
        %707 = vmatprep.subr.mxu0 0.0
        %708 = vmatpush1.msra.mxu0 %v673
        %709 = vmatprep.subr.mxu0 0.0
        %710 = vmatpush1.msra.mxu0 %v674
        %711 = vmatprep.subr.mxu0 0.0
        %712 = vmatpush1.msra.mxu0 %v675
        %713 = vmatprep.subr.mxu0 0.0
        %714 = vmatpush1.msra.mxu0 %v676
        %715 = vmatprep.subr.mxu0 0.0
        %716 = vmatpush1.msra.mxu0 %v677
        %717 = vmatprep.subr.mxu0 0.0
        %718 = vmatpush1.msra.mxu0 %v678
        %719 = vmatprep.subr.mxu0 0.0
        %720 = vmatpush1.msra.mxu0 %v679
        %721 = vmatprep.subr.mxu0 0.0
        %722 = vmatpush1.msra.mxu0 %v680
        %723 = vmatprep.subr.mxu0 0.0
        %724 = vmatpush1.msra.mxu0 %v681
        %725 = vmatprep.subr.mxu0 0.0
        %726 = vmatpush1.msra.mxu0 %v682
        %727 = vmatprep.subr.mxu0 0.0
        %728 = vmatpush1.msra.mxu0 %v683
        %729 = vmatprep.subr.mxu0 0.0
        %730 = vmatpush1.msra.mxu0 %v684
        %731 = vmatprep.subr.mxu0 0.0
        %732 = vmatpush1.msra.mxu0 %v685
        %733 = vmatprep.subr.mxu0 0.0
        %734 = vmatpush1.msra.mxu0 %v686
        %735 = vmatprep.subr.mxu0 0.0
        %736 = vmatpush1.msra.mxu0 %v687
        %737 = vmatprep.subr.mxu0 0.0
        %738 = vmatpush1.msra.mxu0 %v688
        %739 = vmatprep.subr.mxu0 0.0
        %740 = vmatpush1.msra.mxu0 %v689
        %741 = vmatprep.subr.mxu0 0.0
        %742 = vmatpush1.msra.mxu0 %v690
        %743 = vmatprep.subr.mxu0 0.0
        %744 = vmatpush1.msra.mxu0 %v691
        %745 = vmatprep.subr.mxu0 0.0
        %746 = vmatpush1.msra.mxu0 %v692
        %747 = vmatprep.subr.mxu0 0.0
        %748 = vmatpush1.msra.mxu0 %v693
        %749 = vmatprep.subr.mxu0 0.0
        %750 = vmatpush1.msra.mxu0 %v694
        %751 = vmatprep.subr.mxu0 0.0
        %752 = vmatpush1.msra.mxu0 %v695
        %753 = vmatprep.subr.mxu0 0.0
        %754 = vmatpush1.msra.mxu0 %v696
        %755 = vmatprep.subr.mxu0 0.0
        %756 = vmatpush1.msra.mxu0 %v697
        %757 = vmatprep.subr.mxu0 0.0
        %758 = vmatpush1.msra.mxu0 %v698
        %759 = vmatprep.subr.mxu0 0.0
        %760 = vmatpush1.msra.mxu0 %v699
        %761 = vmatprep.subr.mxu0 0.0
        %762 = vmatpush1.msra.mxu0 %v700
        %763 = vmatprep.subr.mxu0 0.0
        %764 = vmatpush1.msra.mxu0 %v701
        %765 = vmatprep.subr.mxu0 0.0
        %766 = vmatpush1.msra.mxu0 %v702
        %767 = vmatprep.mubr.f32.mxu0 %v670
        %768 = vmatmul.mubr.f32.gmra.mrb[0].mxu0 %v668
        %v769 = vpop.f32.mrb[0].mxu0
        %v770 = vadd.f32 0.0, %v769
        %v771 = vpop.f32.mrb[0].mxu0
        %772 = vdwg.mxu0
        %v773 = vmul.f32 %v668, %v391
        %v774 = vmul.f32 %v670, %v392
        %775 = vmatprep.subr.mxu0 0.0
        %776 = vmatpush1.msra.mxu0 %v671
        %777 = vmatprep.subr.mxu0 0.0
        %778 = vmatpush1.msra.mxu0 %v672
        %779 = vmatprep.subr.mxu0 0.0
        %780 = vmatpush1.msra.mxu0 %v673
        %781 = vmatprep.subr.mxu0 0.0
        %782 = vmatpush1.msra.mxu0 %v674
        %783 = vmatprep.subr.mxu0 0.0
        %784 = vmatpush1.msra.mxu0 %v675
        %785 = vmatprep.subr.mxu0 0.0
        %786 = vmatpush1.msra.mxu0 %v676
        %787 = vmatprep.subr.mxu0 0.0
        %788 = vmatpush1.msra.mxu0 %v677
        %789 = vmatprep.subr.mxu0 0.0
        %790 = vmatpush1.msra.mxu0 %v678
        %791 = vmatprep.subr.mxu0 0.0
        %792 = vmatpush1.msra.mxu0 %v679
        %793 = vmatprep.subr.mxu0 0.0
        %794 = vmatpush1.msra.mxu0 %v680
        %795 = vmatprep.subr.mxu0 0.0
        %796 = vmatpush1.msra.mxu0 %v681
        %797 = vmatprep.subr.mxu0 0.0
        %798 = vmatpush1.msra.mxu0 %v682
        %799 = vmatprep.subr.mxu0 0.0
        %800 = vmatpush1.msra.mxu0 %v683
        %801 = vmatprep.subr.mxu0 0.0
        %802 = vmatpush1.msra.mxu0 %v684
        %803 = vmatprep.subr.mxu0 0.0
        %804 = vmatpush1.msra.mxu0 %v685
        %805 = vmatprep.subr.mxu0 0.0
        %806 = vmatpush1.msra.mxu0 %v686
        %807 = vmatprep.subr.mxu0 0.0
        %808 = vmatpush1.msra.mxu0 %v687
        %809 = vmatprep.subr.mxu0 0.0
        %810 = vmatpush1.msra.mxu0 %v688
        %811 = vmatprep.subr.mxu0 0.0
        %812 = vmatpush1.msra.mxu0 %v689
        %813 = vmatprep.subr.mxu0 0.0
        %814 = vmatpush1.msra.mxu0 %v690
        %815 = vmatprep.subr.mxu0 0.0
        %816 = vmatpush1.msra.mxu0 %v691
        %817 = vmatprep.subr.mxu0 0.0
        %818 = vmatpush1.msra.mxu0 %v692
        %819 = vmatprep.subr.mxu0 0.0
        %820 = vmatpush1.msra.mxu0 %v693
        %821 = vmatprep.subr.mxu0 0.0
        %822 = vmatpush1.msra.mxu0 %v694
        %823 = vmatprep.subr.mxu0 0.0
        %824 = vmatpush1.msra.mxu0 %v695
        %825 = vmatprep.subr.mxu0 0.0
        %826 = vmatpush1.msra.mxu0 %v696
        %827 = vmatprep.subr.mxu0 0.0
        %828 = vmatpush1.msra.mxu0 %v697
        %829 = vmatprep.subr.mxu0 0.0
        %830 = vmatpush1.msra.mxu0 %v698
        %831 = vmatprep.subr.mxu0 0.0
        %832 = vmatpush1.msra.mxu0 %v699
        %833 = vmatprep.subr.mxu0 0.0
        %834 = vmatpush1.msra.mxu0 %v700
        %835 = vmatprep.subr.mxu0 0.0
        %836 = vmatpush1.msra.mxu0 %v701
        %837 = vmatprep.subr.mxu0 0.0
        %838 = vmatpush1.msra.mxu0 %v702
        %839 = vmatprep.mubr.f32.mxu0 %v774
        %840 = vmatmul.mubr.f32.gmra.mrb[0].mxu0 %v773
        %v841 = vpop.f32.mrb[0].mxu0
        %v842 = vadd.f32 0.0, %v841
        %v843 = vpop.f32.mrb[0].mxu0
        %844 = vdwg.mxu0
        %v845 = vmax.f32 %v770, 1e-30
        %v846 = vrcp.pop %v845
        %v847 = vmul.f32 %v842, %v846
        %v848 = vadd.f32 %v847, 1.0
        %v849 = vmul.f32 %v848, %v567
        %v850 = vld [vmem:[%s6 + $0x1] sm:$0x1]
        %v851 = vlaneseq
        %v852 = vshrl.u32 %v851, 7
        %v853 = vsub.s32 0, %v852
        %v854 = vrot.slane %v850, %v853
        %v855 = vadd.f32 %v849, %v854
        %v856 = vmax.f32 %v855, 0.0
        %857 = vst [vmem:[#allocation2] sm:$0x1] 0.0
        %858 = vst [vmem:[#allocation2 + $0x9] sm:$0x1] 0.0
        %859 = vst [vmem:[#allocation2 + $0x1] sm:$0xff] %v856
        %v860 = vld [vmem:[#allocation2] sm:$0xff]
        %v861 = vld [vmem:[#allocation2 + $0x1] sm:$0xff]
        %v862 = vld [vmem:[#allocation2 + $0x2] sm:$0xff]
        %v863 = vld [vmem:[#allocation12] sm:$0xff]
        %v864 = vld [vmem:[#allocation12 + $0x8] sm:$0xff]
        %v865 = vld [vmem:[#allocation12 + $0x10] sm:$0xff]
        %v866 = vld [vmem:[#allocation12 + $0x18] sm:$0xff]
        %v867 = vld [vmem:[#allocation12 + $0x20] sm:$0xff]
        %v868 = vld [vmem:[#allocation12 + $0x28] sm:$0xff]
        %v869 = vld [vmem:[#allocation12 + $0x30] sm:$0xff]
        %v870 = vld [vmem:[#allocation12 + $0x38] sm:$0xff]
        %v871 = vld [vmem:[#allocation12 + $0x40] sm:$0xff]
        %v872 = vld [vmem:[#allocation12 + $0x48] sm:$0xff]
        %v873 = vld [vmem:[#allocation12 + $0x50] sm:$0xff]
        %v874 = vld [vmem:[#allocation12 + $0x58] sm:$0xff]
        %v875 = vld [vmem:[#allocation12 + $0x60] sm:$0xff]
        %v876 = vld [vmem:[#allocation12 + $0x68] sm:$0xff]
        %v877 = vld [vmem:[#allocation12 + $0x70] sm:$0xff]
        %v878 = vld [vmem:[#allocation12 + $0x78] sm:$0xff]
        %v879 = vld [vmem:[#allocation12 + $0x80] sm:$0xff]
        %v880 = vld [vmem:[#allocation12 + $0x88] sm:$0xff]
        %v881 = vld [vmem:[#allocation12 + $0x90] sm:$0xff]
        %v882 = vld [vmem:[#allocation12 + $0x98] sm:$0xff]
        %v883 = vld [vmem:[#allocation12 + $0xa0] sm:$0xff]
        %v884 = vld [vmem:[#allocation12 + $0xa8] sm:$0xff]
        %v885 = vld [vmem:[#allocation12 + $0xb0] sm:$0xff]
        %v886 = vld [vmem:[#allocation12 + $0xb8] sm:$0xff]
        %v887 = vld [vmem:[#allocation12 + $0xc0] sm:$0xff]
        %v888 = vld [vmem:[#allocation12 + $0xc8] sm:$0xff]
        %v889 = vld [vmem:[#allocation12 + $0xd0] sm:$0xff]
        %v890 = vld [vmem:[#allocation12 + $0xd8] sm:$0xff]
        %v891 = vld [vmem:[#allocation12 + $0xe0] sm:$0xff]
        %v892 = vld [vmem:[#allocation12 + $0xe8] sm:$0xff]
        %v893 = vld [vmem:[#allocation12 + $0xf0] sm:$0xff]
        %v894 = vld [vmem:[#allocation12 + $0xf8] sm:$0xff]
        %v895 = vld [vmem:[#allocation12 + $0x100] sm:$0xff]
        %v896 = vld [vmem:[#allocation12 + $0x108] sm:$0xff]
        %v897 = vld [vmem:[#allocation12 + $0x110] sm:$0xff]
        %v898 = vld [vmem:[#allocation12 + $0x118] sm:$0xff]
        %v899 = vld [vmem:[#allocation12 + $0x120] sm:$0xff]
        %v900 = vld [vmem:[#allocation12 + $0x128] sm:$0xff]
        %v901 = vld [vmem:[#allocation12 + $0x130] sm:$0xff]
        %v902 = vld [vmem:[#allocation12 + $0x138] sm:$0xff]
        %v903 = vld [vmem:[#allocation12 + $0x140] sm:$0xff]
        %v904 = vld [vmem:[#allocation12 + $0x148] sm:$0xff]
        %v905 = vld [vmem:[#allocation12 + $0x150] sm:$0xff]
        %v906 = vld [vmem:[#allocation12 + $0x158] sm:$0xff]
        %v907 = vld [vmem:[#allocation12 + $0x160] sm:$0xff]
        %v908 = vld [vmem:[#allocation12 + $0x168] sm:$0xff]
        %v909 = vld [vmem:[#allocation12 + $0x170] sm:$0xff]
        %v910 = vld [vmem:[#allocation12 + $0x178] sm:$0xff]
        %911 = vmatprep.subr.mxu0 0.0
        %912 = vmatpush1.msra.mxu0 %v863
        %913 = vmatprep.subr.mxu0 0.0
        %914 = vmatpush1.msra.mxu0 %v864
        %915 = vmatprep.subr.mxu0 0.0
        %916 = vmatpush1.msra.mxu0 %v865
        %917 = vmatprep.subr.mxu0 0.0
        %918 = vmatpush1.msra.mxu0 %v866
        %919 = vmatprep.subr.mxu0 0.0
        %920 = vmatpush1.msra.mxu0 %v867
        %921 = vmatprep.subr.mxu0 0.0
        %922 = vmatpush1.msra.mxu0 %v868
        %923 = vmatprep.subr.mxu0 0.0
        %924 = vmatpush1.msra.mxu0 %v869
        %925 = vmatprep.subr.mxu0 0.0
        %926 = vmatpush1.msra.mxu0 %v870
        %927 = vmatprep.subr.mxu0 0.0
        %928 = vmatpush1.msra.mxu0 %v871
        %929 = vmatprep.subr.mxu0 0.0
        %930 = vmatpush1.msra.mxu0 %v872
        %931 = vmatprep.subr.mxu0 0.0
        %932 = vmatpush1.msra.mxu0 %v873
        %933 = vmatprep.subr.mxu0 0.0
        %934 = vmatpush1.msra.mxu0 %v874
        %935 = vmatprep.subr.mxu0 0.0
        %936 = vmatpush1.msra.mxu0 %v875
        %937 = vmatprep.subr.mxu0 0.0
        %938 = vmatpush1.msra.mxu0 %v876
        %939 = vmatprep.subr.mxu0 0.0
        %940 = vmatpush1.msra.mxu0 %v877
        %941 = vmatprep.subr.mxu0 0.0
        %942 = vmatpush1.msra.mxu0 %v878
        %943 = vmatprep.subr.mxu0 0.0
        %944 = vmatpush1.msra.mxu0 %v879
        %945 = vmatprep.subr.mxu0 0.0
        %946 = vmatpush1.msra.mxu0 %v880
        %947 = vmatprep.subr.mxu0 0.0
        %948 = vmatpush1.msra.mxu0 %v881
        %949 = vmatprep.subr.mxu0 0.0
        %950 = vmatpush1.msra.mxu0 %v882
        %951 = vmatprep.subr.mxu0 0.0
        %952 = vmatpush1.msra.mxu0 %v883
        %953 = vmatprep.subr.mxu0 0.0
        %954 = vmatpush1.msra.mxu0 %v884
        %955 = vmatprep.subr.mxu0 0.0
        %956 = vmatpush1.msra.mxu0 %v885
        %957 = vmatprep.subr.mxu0 0.0
        %958 = vmatpush1.msra.mxu0 %v886
        %959 = vmatprep.subr.mxu0 0.0
        %960 = vmatpush1.msra.mxu0 %v887
        %961 = vmatprep.subr.mxu0 0.0
        %962 = vmatpush1.msra.mxu0 %v888
        %963 = vmatprep.subr.mxu0 0.0
        %964 = vmatpush1.msra.mxu0 %v889
        %965 = vmatprep.subr.mxu0 0.0
        %966 = vmatpush1.msra.mxu0 %v890
        %967 = vmatprep.subr.mxu0 0.0
        %968 = vmatpush1.msra.mxu0 %v891
        %969 = vmatprep.subr.mxu0 0.0
        %970 = vmatpush1.msra.mxu0 %v892
        %971 = vmatprep.subr.mxu0 0.0
        %972 = vmatpush1.msra.mxu0 %v893
        %973 = vmatprep.subr.mxu0 0.0
        %974 = vmatpush1.msra.mxu0 %v894
        %975 = vmatprep.mubr.f32.mxu0 %v861
        %976 = vmatmul.mubr.f32.gmra.mrb[0].mxu0 %v860
        %v977 = vpop.f32.mrb[0].mxu0
        %v978 = vadd.f32 %v490, %v977
        %v979 = vpop.f32.mrb[0].mxu0
        %980 = vdwg.mxu0
        %981 = vmatprep.subr.mxu0 0.0
        %982 = vmatpush1.msra.mxu0 %v895
        %983 = vmatprep.subr.mxu0 0.0
        %984 = vmatpush1.msra.mxu0 %v896
        %985 = vmatprep.subr.mxu0 0.0
        %986 = vmatpush1.msra.mxu0 %v897
        %987 = vmatprep.subr.mxu0 0.0
        %988 = vmatpush1.msra.mxu0 %v898
        %989 = vmatprep.subr.mxu0 0.0
        %990 = vmatpush1.msra.mxu0 %v899
        %991 = vmatprep.subr.mxu0 0.0
        %992 = vmatpush1.msra.mxu0 %v900
        %993 = vmatprep.subr.mxu0 0.0
        %994 = vmatpush1.msra.mxu0 %v901
        %995 = vmatprep.subr.mxu0 0.0
        %996 = vmatpush1.msra.mxu0 %v902
        %997 = vmatprep.subr.mxu0 0.0
        %998 = vmatpush1.msra.mxu0 %v903
        %999 = vmatprep.subr.mxu0 0.0
        %1000 = vmatpush1.msra.mxu0 %v904
        %1001 = vmatprep.subr.mxu0 0.0
        %1002 = vmatpush1.msra.mxu0 %v905
        %1003 = vmatprep.subr.mxu0 0.0
        %1004 = vmatpush1.msra.mxu0 %v906
        %1005 = vmatprep.subr.mxu0 0.0
        %1006 = vmatpush1.msra.mxu0 %v907
        %1007 = vmatprep.subr.mxu0 0.0
        %1008 = vmatpush1.msra.mxu0 %v908
        %1009 = vmatprep.subr.mxu0 0.0
        %1010 = vmatpush1.msra.mxu0 %v909
        %1011 = vmatprep.subr.mxu0 0.0
        %1012 = vmatpush1.msra.mxu0 %v910
        %1013 = vmatprep.subr.mxu0 0.0
        %1014 = vmatpush1.msra.mxu0 0.0
        %1015 = vmatprep.subr.mxu0 0.0
        %1016 = vmatpush1.msra.mxu0 0.0
        %1017 = vmatprep.subr.mxu0 0.0
        %1018 = vmatpush1.msra.mxu0 0.0
        %1019 = vmatprep.subr.mxu0 0.0
        %1020 = vmatpush1.msra.mxu0 0.0
        %1021 = vmatprep.subr.mxu0 0.0
        %1022 = vmatpush1.msra.mxu0 0.0
        %1023 = vmatprep.subr.mxu0 0.0
        %1024 = vmatpush1.msra.mxu0 0.0
        %1025 = vmatprep.subr.mxu0 0.0
        %1026 = vmatpush1.msra.mxu0 0.0
        %1027 = vmatprep.subr.mxu0 0.0
        %1028 = vmatpush1.msra.mxu0 0.0
        %1029 = vmatprep.subr.mxu0 0.0
        %1030 = vmatpush1.msra.mxu0 0.0
        %1031 = vmatprep.subr.mxu0 0.0
        %1032 = vmatpush1.msra.mxu0 0.0
        %1033 = vmatprep.subr.mxu0 0.0
        %1034 = vmatpush1.msra.mxu0 0.0
        %1035 = vmatprep.subr.mxu0 0.0
        %1036 = vmatpush1.msra.mxu0 0.0
        %1037 = vmatprep.subr.mxu0 0.0
        %1038 = vmatpush1.msra.mxu0 0.0
        %1039 = vmatprep.subr.mxu0 0.0
        %1040 = vmatpush1.msra.mxu0 0.0
        %1041 = vmatprep.subr.mxu0 0.0
        %1042 = vmatpush1.msra.mxu0 0.0
        %1043 = vmatprep.subr.mxu0 0.0
        %1044 = vmatpush1.msra.mxu0 0.0
        %1045 = vmatprep.mubr.f32.mxu0 0.0
        %1046 = vmatmul.mubr.f32.gmra.mrb[0].mxu0 %v862
        %v1047 = vpop.f32.mrb[0].mxu0
        %v1048 = vadd.f32 %v978, %v1047
        %v1049 = vpop.f32.mrb[0].mxu0
        %1050 = vdwg.mxu0
        %v1051 = vld [vmem:[%s6 + $0x2] sm:$0x1]
        %v1052 = vlaneseq
        %v1053 = vshrl.u32 %v1052, 7
        %v1054 = vsub.s32 0, %v1053
        %v1055 = vrot.slane %v1051, %v1054
        %v1056 = vadd.f32 %v1048, %v1055
        %v1057 = vmax.f32 %v1056, 0.0
        %1058 = vst [vmem:[%s389] sm:$0xff] %v1057
        %s1059 = sand.u32 %s194, 1
        %s1060 = scalar_lea.sflag [#allocation5], %s1059
        %s1061 = sand.u32 %s194, 1
        %s1062 = smul.addr %s1061, 8
        %s1063 = scalar_lea.vmem [#allocation14], %s1062
        // Predicated region
        $region73: #{tpu_custom_call.1} parent=47 // pred_check
          %p1064 = pneg %p204
        $region74: #{tpu_custom_call.1} parent=47 // pred_check_branch
          %1066 = sbr.rel (%p1064) target = $region76
        $region75: #{tpu_custom_call.1} parent=47 // pred_region
          %s1068 = ssub.s32 128, 128
          %1069 = vsyncadd %s1060, %s1068
          %s1070 = smul.addr %s29, 128
          %s1071 = scalar_lea.hbm %s7, %s1070
          %s1073 = sshll.u32 %s1063, 4
          %s1074 = int_to_ptr.vmem [resolvable:$true] %s1073
          %1076 = dma.vmem_to_hbm [thread:$0]  %s1074, 128, %s1071, %s1060
        $region76: #{tpu_custom_call.1} parent=47 // pred_fallthru
          _
      $region48: #{tpu_custom_call.1} parent=5 // pred_fallthru
        _
      %p1077 = scmp.le.s32.totalorder 2, %s24
      // Predicated region
      $region77: #{tpu_custom_call.1} parent=5 // pred_check
        %p1078 = pneg %p1077
      $region78: #{tpu_custom_call.1} parent=5 // pred_check_branch
        %1080 = sbr.rel (%p1078) target = $region80
      $region79: #{tpu_custom_call.1} parent=5 // pred_region
        %s1081 = ssub.s32 %s24, 2
        // Predicated region
        $region81: #{tpu_custom_call.1} parent=79 // pred_check
          %p1082 = pneg %p210
        $region82: #{tpu_custom_call.1} parent=79 // pred_check_branch
          %1084 = sbr.rel (%p1082) target = $region84
        $region83: #{tpu_custom_call.1} parent=79 // pred_region
          %s1085 = sand.u32 %s195, 1
          %s1086 = scalar_lea.sflag [#allocation5], %s1085
          %s1087 = sand.u32 %s195, 1
          %s1088 = smul.addr %s1087, 8
          %s1089 = scalar_lea.vmem [#allocation14], %s1088
          %1090 = dma.done %s1086, 128
        $region84: #{tpu_custom_call.1} parent=79 // pred_fallthru
          _
      $region80: #{tpu_custom_call.1} parent=5 // pred_fallthru
        _
    $region6: #{tpu_custom_call.1} parent=1 // loop_footer
      %s28 = sadd.s32 1, %s24
    $region7: #{tpu_custom_call.1} parent=1 // loop_footer_branch
      %23 = sbr.rel target = $region3
    $region8: #{tpu_custom_call.1} parent=1 // loop_exit
      _
    %1091 = vsyncpa [#allocation4], 1
    %s1092 = scalar_lea.sflag [#allocation4], 1
    %1093 = vsyncpa %s1092, 1
    %1094 = vsyncpa [#allocation7], 1
    %s1095 = scalar_lea.sflag [#allocation7], 1
    %1096 = vsyncpa %s1095, 1
    %1097 = vsyncpa [#allocation10], 1
    %1098 = vsyncpa [#allocation13], 1
    %1099 = vsyncpa [#allocation5], 1
    %s1100 = scalar_lea.sflag [#allocation5], 1
    %1101 = vsyncpa %s1100, 1

</llo_original>
